<compile_context>
chip_gen: v7x
topology: tpu7x:2x2x1
jax: 0.10.0
libtpu: 0.0.40
codegen_flags: <defaults>
</compile_context>

<pallas_src>
import numpy as np
import jax
import jax.numpy as jnp
from jax.experimental import pallas as pl
from jax.experimental.pallas import tpu as pltpu


# ----------------------------------------------------------------------------
# Kernel
# ----------------------------------------------------------------------------
def _mp_kernel(tg_ref, tv_ref, xi_ref, x_ref, eq_ref, w_ref, out_ref):
    """Grid = (s: edge split [parallel], j: output-lane tiles [parallel],
               t: edge tiles [arbitrary / reduction]).

    Every edge tile is homogeneous in kernel id (grouped & padded in the
    wrapper), so no per-row masking is needed:
        y    = X_tile[tE, D1] @ W[group(t)][D1, block_d]   (bf16 MXU, f32 acc)
        out += onehot(e_query_tile)[M, tE] @ y             (bf16 MXU scatter-add)
    Padding rows are exactly zero and contribute nothing; whole padding tiles
    are skipped via the prefetched valid flag.
    """
    s = pl.program_id(0)
    t = pl.program_id(2)
    gt = s * pl.num_programs(2) + t            # global edge-tile index

    @pl.when(t == 0)
    def _():
        out_ref[...] = jnp.zeros_like(out_ref)

    @pl.when(tv_ref[gt] != 0)                  # skip all-zero padding tiles
    def _():
        # Per-edge messages for this tile's kernel id: [tile_e, block_d] f32.
        y = jnp.dot(x_ref[...], w_ref[0], preferred_element_type=jnp.float32)

        m = out_ref.shape[1]
        te = eq_ref.shape[1]
        # bf16 one-hot scatter-add on the MXU; accumulation stays f32 in VMEM.
        onehot = (eq_ref[...] ==
                  jax.lax.broadcasted_iota(jnp.int32, (m, te), 0)
                  ).astype(jnp.bfloat16)                         # [M, tE]
        out_ref[0] += jnp.dot(onehot, y.astype(jnp.bfloat16),
                              preferred_element_type=jnp.float32)


# ----------------------------------------------------------------------------
# Schedule (analog of the torch kernel_dist re-batching)
# ----------------------------------------------------------------------------
def kernel_dist(e_kernel, num_kernels, tile_e):
    """Groups edges by kernel id and pads each group to a multiple of tile_e.

    Returns:
        tile_group [n_tiles] int32 : kernel id used by each edge tile
        tile_valid [n_tiles] int32 : 1 if the tile contains real edges
        x_tile_idx [n_tiles] int32 : X/e_query block index (dead tiles alias
                                     the last valid tile -> no extra DMA)
        dest       [E]       int32 : destination row of each edge in the
                                     grouped / padded edge layout
        n_tiles    (python int)    : static number of edge tiles (upper bound)
    """
    E = int(e_kernel.shape[0])
    K0 = int(num_kernels)
    ek = e_kernel.astype(jnp.int32)

    counts = jnp.bincount(ek, length=K0).astype(jnp.int32)          # [K0]
    starts = jnp.cumsum(counts) - counts                            # [K0]
    tiles_per_group = (counts + tile_e - 1) // tile_e                # [K0]
    padded_starts = (jnp.cumsum(tiles_per_group) - tiles_per_group) * tile_e

    order = jnp.argsort(ek)
    sorted_pos = jnp.zeros((E,), jnp.int32).at[order].set(
        jnp.arange(E, dtype=jnp.int32))
    rank = sorted_pos - starts[ek]                                   # pos in group
    dest = (padded_starts[ek] + rank).astype(jnp.int32)              # unique

    n_tiles = (E + tile_e - 1) // tile_e + K0                        # static bound
    tile_bounds = jnp.cumsum(tiles_per_group)                        # [K0]
    total_valid = tile_bounds[-1]
    tids = jnp.arange(n_tiles, dtype=jnp.int32)
    tile_group = jnp.minimum(
        jnp.searchsorted(tile_bounds, tids, side='right'), K0 - 1
    ).astype(jnp.int32)
    tile_valid = (tids < total_valid).astype(jnp.int32)
    x_tile_idx = jnp.clip(jnp.minimum(tids, total_valid - 1),
                          0, n_tiles - 1).astype(jnp.int32)
    return tile_group, tile_valid, x_tile_idx, dest, n_tiles


# ----------------------------------------------------------------------------
# VMEM budgeting / block sizing
# ----------------------------------------------------------------------------
def _vmem_bytes(M, D1, block_d, tile_e):
    out_b = 2 * M * block_d * 4                 # double-buffered f32 out block
    x_b = 2 * tile_e * D1 * 2                   # bf16 X, double buffered
    w_b = 2 * D1 * block_d * 2                  # bf16 W, double buffered
    eq_b = 2 * 8 * tile_e * 4                   # (1, tile_e) int32 sublane-padded
    tmp_b = M * tile_e * 2 + tile_e * block_d * 4 + M * block_d * 4
    return out_b + x_b + w_b + eq_b + tmp_b


def _choose_block_d(M, D1, D2p, tile_e, budget=24 << 20):
    cands = []
    for c in (D2p, 256, 128):
        if c <= D2p and c % 128 == 0 and c not in cands:
            cands.append(c)
    for bd in cands:
        if _vmem_bytes(M, D1, bd, tile_e) <= budget:
            return bd
    return cands[-1]


def _default_num_splits():
    # 2 TensorCores per chip on v7x (and megacore v4 / v5p); 1 on v5e / v6e.
    try:
        kind = jax.devices()[0].device_kind.lower()
    except Exception:
        return 1
    return 2 if any(s in kind for s in ("v7", "7x", "v4", "v5p")) else 1


# ----------------------------------------------------------------------------
# Wrapper
# ----------------------------------------------------------------------------
def message_passing_pallas(kernel_w, ref_feat, e_kernel, e_ref, e_query,
                           num_queries, dist_info=None, e_weight=None,
                           *, tile_e=256, num_splits=None):
    K0, D1, D2 = (int(d) for d in kernel_w.shape)
    M = int(num_queries)
    D2p = ((D2 + 127) // 128) * 128              # lane-dense output width

    if dist_info is None:
        dist_info = kernel_dist(e_kernel, K0, tile_e)
    tile_group, tile_valid, x_tile_idx, dest, n_tiles = dist_info
    L = n_tiles * tile_e

    block_d = _choose_block_d(M, D1, D2p, tile_e)
    n_j = D2p // block_d

    if num_splits is None:
        num_splits = _default_num_splits() if n_j == 1 else 1
    num_splits = max(1, min(int(num_splits), n_tiles))
    tps = -(-n_tiles // num_splits)              # tiles per split
    n_tiles_pad = num_splits * tps
    pad = n_tiles_pad - n_tiles
    if pad > 0:
        tile_group_p = jnp.pad(tile_group, (0, pad), mode='edge')
        tile_valid_p = jnp.pad(tile_valid, (0, pad))          # zeros = dead
        x_tile_idx_p = jnp.pad(x_tile_idx, (0, pad), mode='edge')
    else:
        tile_group_p, tile_valid_p, x_tile_idx_p = tile_group, tile_valid, x_tile_idx

    # ---- glue (plain JAX): gather + per-edge weight + grouped/padded layout ----
    # TODO(synk): fuse this gather/scale/scatter into the kernel via a manual
    # DMA row-gather (scalar-prefetched e_ref / dest) to save an HBM round trip.
    x = ref_feat[e_ref.astype(jnp.int32)]                          # [E, D1]
    if e_weight is not None:
        x = x * e_weight.astype(x.dtype)[:, None]
    x_g = jnp.zeros((L, D1), jnp.bfloat16).at[dest].set(x.astype(jnp.bfloat16))
    eq_g = jnp.zeros((L,), jnp.int32).at[dest].set(
        e_query.astype(jnp.int32)).reshape(1, L)
    w_p = jnp.zeros((K0, D1, D2p), jnp.bfloat16).at[:, :, :D2].set(
        kernel_w.astype(jnp.bfloat16))

    est = _vmem_bytes(M, D1, block_d, tile_e)
    vmem_limit = int(min(max(2 * est, 32 << 20), 56 << 20))

    cost = pl.CostEstimate(
        flops=2 * L * D1 * D2p + 2 * L * M * D2p,
        transcendentals=0,
        bytes_accessed=(n_j * L * D1 * 2            # X re-read once per j
                        + n_j * L * 4               # e_query tiles
                        + n_tiles_pad * n_j * D1 * block_d * 2   # W tiles
                        + num_splits * M * D2p * 4))             # output

    in_specs = [
        # X tile (bf16); dead tiles alias an existing block -> no extra DMA.
        pl.BlockSpec((tile_e, D1),
                     lambda s, j, t, tg, tv, xi: (xi[s * tps + t], 0)),
        # e_query tile (int32)
        pl.BlockSpec((1, tile_e),
                     lambda s, j, t, tg, tv, xi: (0, xi[s * tps + t])),
        # W[group(t)] lane slab
        pl.BlockSpec((1, D1, block_d),
                     lambda s, j, t, tg, tv, xi: (tg[s * tps + t], 0, j)),
    ]
    out_specs = pl.BlockSpec((1, M, block_d),
                             lambda s, j, t, tg, tv, xi: (s, 0, j))

    out_p = pl.pallas_call(
        _mp_kernel,
        out_shape=jax.ShapeDtypeStruct((num_splits, M, D2p), jnp.float32),
        grid_spec=pltpu.PrefetchScalarGridSpec(
            num_scalar_prefetch=3,
            grid=(num_splits, n_j, tps),
            in_specs=in_specs,
            out_specs=out_specs,
        ),
        compiler_params=pltpu.CompilerParams(
            dimension_semantics=("parallel", "parallel", "arbitrary"),
            vmem_limit_bytes=vmem_limit),
        cost_estimate=cost,
    )(tile_group_p, tile_valid_p, x_tile_idx_p, x_g, eq_g, w_p)

    out = out_p.sum(axis=0) if num_splits > 1 else out_p[0]
    return out[:, :D2]


# ----------------------------------------------------------------------------
# Module
# ----------------------------------------------------------------------------
def initialize_kernel_weight(input_channel, output_channel, num_kernels, key):
    # Matches torch initialize_kernel_weight: uniform(-bound, bound) with
    # gain = calculate_gain('leaky_relu', sqrt(5)) = sqrt(2 / (1 + 5)),
    # fan_in = input_channel * num_kernels, bound = sqrt(3) * gain / sqrt(fan_in).
    fan_in = input_channel * num_kernels
    gain = np.sqrt(2.0 / (1.0 + 5.0))
    std = gain / np.sqrt(fan_in)
    bound = np.sqrt(3.0) * std
    return jax.random.uniform(key, (num_kernels, input_channel, output_channel),
                              jnp.float32, minval=-bound, maxval=bound)


class MessagePassingBlock:
    def __init__(self, input_channel, output_channel, num_kernels, indice_key,
                 key, tile_e=256):
        self.input_channel = input_channel
        self.output_channel = output_channel
        self.K0 = num_kernels
        self.key = indice_key
        self.tile_e = tile_e
        self.kernel_weights = initialize_kernel_weight(
            input_channel, output_channel, num_kernels, key)

    def __call__(self, ref_feat, e_kernel, e_ref, e_query, num_queries,
                 conv_dict, e_weight=None):
        # NOTE: like the torch module, dist_info is cached keyed only by
        # indice_key — callers must not reuse a key with a different e_kernel.
        dist_key = f'{self.key}_dist'
        if dist_key in conv_dict:
            dist_info = conv_dict[dist_key]
        else:
            dist_info = kernel_dist(e_kernel, self.K0, self.tile_e)
            conv_dict[dist_key] = dist_info
        out = message_passing_pallas(
            self.kernel_weights, ref_feat, e_kernel, e_ref, e_query,
            num_queries, dist_info=dist_info, e_weight=e_weight,
            tile_e=self.tile_e)
        return out, conv_dict


# ----------------------------------------------------------------------------
# Reference + test
# ----------------------------------------------------------------------------
def _reference(kernel_w, ref_feat, e_kernel, e_ref, e_query, num_queries, e_weight):
    x = ref_feat[e_ref]
    if e_weight is not None:
        x = x * e_weight[:, None]
    # match the kernel's bf16 MXU inputs (f32 accumulation)
    x = x.astype(jnp.bfloat16).astype(jnp.float32)
    w = kernel_w.astype(jnp.bfloat16).astype(jnp.float32)
    y = jnp.einsum('ed,edo->eo', x, w[e_kernel])
    return jax.ops.segment_sum(y, e_query, num_segments=num_queries)


if __name__ == "__main__":
    key = jax.random.PRNGKey(0)
    k_w, k_feat, k_ek, k_er, k_eq, k_ew = jax.random.split(key, 6)

    # Small shapes consistent with the module's forward
    D1, D2, K0 = 32, 32, 4          # input_channel, output_channel, num_kernels
    N, M, E = 16, 8, 64             # num refs, num queries, num edges

    block = MessagePassingBlock(D1, D2, K0, "mp0", k_w, tile_e=128)

    ref_feat = jax.random.normal(k_feat, (N, D1), jnp.float32)
    e_kernel = jax.random.randint(k_ek, (E,), 0, K0, jnp.int32)
    e_ref = jax.random.randint(k_er, (E,), 0, N, jnp.int32)
    e_query = jax.random.randint(k_eq, (E,), 0, M, jnp.int32)
    e_weight = jax.random.uniform(k_ew, (E,), jnp.float32)

    conv_dict = {}
    out, conv_dict = block(ref_feat, e_kernel, e_ref, e_query, M,
                           conv_dict, e_weight)
    out = jax.block_until_ready(out)

    expected = _reference(block.kernel_weights, ref_feat, e_kernel, e_ref,
                          e_query, M, e_weight)
    assert out.shape == (M, D2) and out.dtype == jnp.float32
    np.testing.assert_allclose(np.asarray(out), np.asarray(expected),
                               rtol=2e-2, atol=2e-2)
    print("KERNEL_OK")
</pallas_src>

<mosaic_0001>
module attributes {stable_mosaic.version = 11 : i64} {
  func.func @_mp_kernel(%arg0: i32, %arg1: i32, %arg2: i32, %arg3: memref<5xi32, #tpu.memory_space<smem>>, %arg4: memref<5xi32, #tpu.memory_space<smem>>, %arg5: memref<5xi32, #tpu.memory_space<smem>>, %arg6: memref<128x32xbf16, #tpu.memory_space<vmem>>, %arg7: memref<1x128xi32, #tpu.memory_space<vmem>>, %arg8: memref<1x32x128xbf16, #tpu.memory_space<vmem>>, %arg9: memref<1x8x128xf32, #tpu.memory_space<vmem>>) attributes {dimension_semantics = [#tpu.dimension_semantics<parallel>, #tpu.dimension_semantics<parallel>, #tpu.dimension_semantics<arbitrary>], iteration_bounds = array<i64: 1, 1, 5>, scalar_prefetch = 3 : i64, scratch_operands = 0 : i64, tpu.core_type = #tpu.core_type<tc>, window_params = [{transform_indices = @transform_0, window_bounds = array<i64: 128, 32>}, {transform_indices = @transform_1, window_bounds = array<i64: 1, 128>}, {transform_indices = @transform_2, window_bounds = array<i64: 1, 32, 128>}, {transform_indices = @transform_3, window_bounds = array<i64: 1, 8, 128>}]} {
    %c5_i32 = arith.constant 5 : i32
    %0 = arith.muli %arg0, %c5_i32 : i32
    %1 = arith.addi %0, %arg2 : i32
    %c0_i32 = arith.constant 0 : i32
    %2 = arith.cmpi eq, %arg2, %c0_i32 : i32
    %3 = arith.extui %2 : i1 to i32
    %c0_i32_0 = arith.constant 0 : i32
    %4 = arith.cmpi ne, %3, %c0_i32_0 : i32
    scf.if %4 {
      %cst = arith.constant 0.000000e+00 : f32
      %10 = vector.broadcast %cst : f32 to vector<1x8x128xf32>
      %c0 = arith.constant 0 : index
      %c0_3 = arith.constant 0 : index
      %c0_4 = arith.constant 0 : index
      %11 = vector.load %arg9[%c0, %c0_3, %c0_4] : memref<1x8x128xf32, #tpu.memory_space<vmem>>, vector<1x8x128xf32>
      tpu.vector_store %arg9[%c0, %c0_3, %c0_4], %10 {strides = array<i32>} : memref<1x8x128xf32, #tpu.memory_space<vmem>>, vector<1x8x128xf32>,
    } else {
    }
    %5 = arith.index_cast %1 : i32 to index
    %6 = memref.load %arg4[%5] : memref<5xi32, #tpu.memory_space<smem>>
    %c0_i32_1 = arith.constant 0 : i32
    %7 = arith.cmpi ne, %6, %c0_i32_1 : i32
    %8 = arith.extui %7 : i1 to i32
    %c0_i32_2 = arith.constant 0 : i32
    %9 = arith.cmpi ne, %8, %c0_i32_2 : i32
    scf.if %9 {
      %c0 = arith.constant 0 : index
      %c0_3 = arith.constant 0 : index
      %10 = vector.load %arg6[%c0, %c0_3] : memref<128x32xbf16, #tpu.memory_space<vmem>>, vector<128x32xbf16>
      %c0_4 = arith.constant 0 : index
      %c0_5 = arith.constant 0 : index
      %c0_6 = arith.constant 0 : index
      %11 = vector.load %arg8[%c0_4, %c0_5, %c0_6] : memref<1x32x128xbf16, #tpu.memory_space<vmem>>, vector<1x32x128xbf16>
      %12 = vector.shape_cast %11 : vector<1x32x128xbf16> to vector<32x128xbf16>
      %cst = arith.constant dense<0.000000e+00> : vector<128x128xf32>
      %13 = tpu.matmul %10, %12, %cst {dimension_numbers = #tpu.dot_dimension_numbers<[1], [0], [0], [1], [0, 0, 1, 1], [], []>} : vector<128x32xbf16>, vector<32x128xbf16>, vector<128x128xf32> -> vector<128x128xf32>
      %c0_7 = arith.constant 0 : index
      %c0_8 = arith.constant 0 : index
      %14 = vector.load %arg7[%c0_7, %c0_8] : memref<1x128xi32, #tpu.memory_space<vmem>>, vector<1x128xi32>
      %15 = tpu.iota {dimensions = array<i32: 0>} : vector<8x128xi32>
      %16 = vector.broadcast %14 : vector<1x128xi32> to vector<8x128xi32>
      %17 = arith.cmpi eq, %16, %15 : vector<8x128xi32>
      %18 = arith.extui %17 : vector<8x128xi1> to vector<8x128xi32>
      %19 = arith.sitofp %18 : vector<8x128xi32> to vector<8x128xf32>
      %20 = arith.truncf %19 : vector<8x128xf32> to vector<8x128xbf16>
      %c0_9 = arith.constant 0 : index
      %c0_10 = arith.constant 0 : index
      %c0_11 = arith.constant 0 : index
      %21 = vector.load %arg9[%c0_9, %c0_10, %c0_11] : memref<1x8x128xf32, #tpu.memory_space<vmem>>, vector<1x8x128xf32>
      %22 = vector.shape_cast %21 : vector<1x8x128xf32> to vector<8x128xf32>
      %23 = arith.truncf %13 : vector<128x128xf32> to vector<128x128xbf16>
      %cst_12 = arith.constant dense<0.000000e+00> : vector<8x128xf32>
      %24 = tpu.matmul %20, %23, %cst_12 {dimension_numbers = #tpu.dot_dimension_numbers<[1], [0], [0], [1], [0, 0, 1, 1], [], []>} : vector<8x128xbf16>, vector<128x128xbf16>, vector<8x128xf32> -> vector<8x128xf32>
      %25 = arith.addf %22, %24 : vector<8x128xf32>
      %c0_13 = arith.constant 0 : index
      %c0_14 = arith.constant 0 : index
      %c0_15 = arith.constant 0 : index
      %26 = vector.load %arg9[%c0_13, %c0_14, %c0_15] : memref<1x8x128xf32, #tpu.memory_space<vmem>>, vector<1x8x128xf32>
      %27 = vector.shape_cast %26 : vector<1x8x128xf32> to vector<8x128xf32>
      %28 = vector.shape_cast %25 : vector<8x128xf32> to vector<1x8x128xf32>
      tpu.vector_store %arg9[%c0_13, %c0_14, %c0_15], %28 {strides = array<i32>} : memref<1x8x128xf32, #tpu.memory_space<vmem>>, vector<1x8x128xf32>,
    } else {
    }
    return
  }
  func.func @transform_0(%arg0: i32, %arg1: i32, %arg2: i32, %arg3: memref<5xi32, #tpu.memory_space<smem>>, %arg4: memref<5xi32, #tpu.memory_space<smem>>, %arg5: memref<5xi32, #tpu.memory_space<smem>>) -> (i32, i32) {
    %c5_i32 = arith.constant 5 : i32
    %0 = arith.muli %arg0, %c5_i32 : i32
    %1 = arith.addi %0, %arg2 : i32
    %2 = arith.index_cast %1 : i32 to index
    %3 = memref.load %arg5[%2] : memref<5xi32, #tpu.memory_space<smem>>
    %c0_i32 = arith.constant 0 : i32
    %c0_i32_0 = arith.constant 0 : i32
    return %3, %c0_i32 : i32, i32
  }
  func.func @transform_1(%arg0: i32, %arg1: i32, %arg2: i32, %arg3: memref<5xi32, #tpu.memory_space<smem>>, %arg4: memref<5xi32, #tpu.memory_space<smem>>, %arg5: memref<5xi32, #tpu.memory_space<smem>>) -> (i32, i32) {
    %c5_i32 = arith.constant 5 : i32
    %0 = arith.muli %arg0, %c5_i32 : i32
    %1 = arith.addi %0, %arg2 : i32
    %2 = arith.index_cast %1 : i32 to index
    %3 = memref.load %arg5[%2] : memref<5xi32, #tpu.memory_space<smem>>
    %c0_i32 = arith.constant 0 : i32
    %c0_i32_0 = arith.constant 0 : i32
    return %c0_i32, %3 : i32, i32
  }
  func.func @transform_2(%arg0: i32, %arg1: i32, %arg2: i32, %arg3: memref<5xi32, #tpu.memory_space<smem>>, %arg4: memref<5xi32, #tpu.memory_space<smem>>, %arg5: memref<5xi32, #tpu.memory_space<smem>>) -> (i32, i32, i32) {
    %c5_i32 = arith.constant 5 : i32
    %0 = arith.muli %arg0, %c5_i32 : i32
    %1 = arith.addi %0, %arg2 : i32
    %2 = arith.index_cast %1 : i32 to index
    %3 = memref.load %arg3[%2] : memref<5xi32, #tpu.memory_space<smem>>
    %c0_i32 = arith.constant 0 : i32
    %c0_i32_0 = arith.constant 0 : i32
    return %3, %c0_i32, %arg1 : i32, i32, i32
  }
  func.func @transform_3(%arg0: i32, %arg1: i32, %arg2: i32, %arg3: memref<5xi32, #tpu.memory_space<smem>>, %arg4: memref<5xi32, #tpu.memory_space<smem>>, %arg5: memref<5xi32, #tpu.memory_space<smem>>) -> (i32, i32, i32) {
    %c0_i32 = arith.constant 0 : i32
    %c0_i32_0 = arith.constant 0 : i32
    return %arg0, %c0_i32, %arg1 : i32, i32, i32
  }
}

</mosaic_0001>

<llo_original>
// kernel: tpu_custom_call.1
$region0: #{tpu_custom_call.1}
  #allocation0 [shape = 'u32[]', space=smem, size = 0x4, offset = 0x4, fixed_abs, tag = 'smem constant byte address 0x4 - core index']
  #allocation1 [shape = 'u32[144,128]{1,0:T(1,128)}', space=vmem, size = 0x12000, scoped, tag = 'internal scratch']
  #allocation2 [shape = 's32[1]{0}', space=sflag, size = 0x4, scoped, tag = 'scoped memory for tpu_custom_call.1']
  #allocation3 [shape = 'u8[512]{0}', space=smem, size = 0x200, scoped, tag = 'prefetched SMEM operand 0']
  #allocation4 [shape = 'u8[512]{0}', space=smem, size = 0x200, scoped, tag = 'prefetched SMEM operand 1']
  #allocation5 [shape = 'u8[512]{0}', space=smem, size = 0x200, scoped, tag = 'prefetched SMEM operand 2']
  %s0 = inlined_call_operand.vmem [shape: s32[5], index: 0, kind: input, shape index: {}]
  %s1 = inlined_call_operand.vmem [shape: s32[5], index: 1, kind: input, shape index: {}]
  %s2 = inlined_call_operand.vmem [shape: s32[5], index: 2, kind: input, shape index: {}]
  %s3 = inlined_call_operand.vmem [shape: bf16[640,32], index: 3, kind: input, shape index: {}]
  %s4 = inlined_call_operand.vmem [shape: s32[1,640], index: 4, kind: input, shape index: {}]
  %s5 = inlined_call_operand.vmem [shape: bf16[4,32,128], index: 5, kind: input, shape index: {}]
  %s6 = inlined_call_operand.hbm [shape: f32[1,8,128], index: 6, kind: output, shape index: {}]
  %s7 = sld [smem:[#allocation0]]
  $region53: #{tpu_custom_call.1} parent=0
    _
  %s9 = ssub.s32 1, %s7
  %s10 = scalar_select 0, %s9, %s7
  %s11 = sshll.u32 %s0, 4
  %s12 = int_to_ptr.vmem [resolvable:$true] %s11
  %14 = dma.vmem_to_smem %s12, 16, [#allocation3], [#allocation2]
  %s15 = sshll.u32 %s1, 4
  %s16 = int_to_ptr.vmem [resolvable:$true] %s15
  %18 = dma.vmem_to_smem %s16, 16, [#allocation4], [#allocation2]
  %s19 = sshll.u32 %s2, 4
  %s20 = int_to_ptr.vmem [resolvable:$true] %s19
  %22 = dma.vmem_to_smem %s20, 16, [#allocation5], [#allocation2]
  %23 = dma.done [#allocation2], 48
  %24 = sfence
  $region1: #{tpu_custom_call.1} parent=0
    #allocation6 [shape = 'u8[4096]{0}', space=vmem, size = 0x1000, scoped, tag = 'output window, operand 0, single buffered']
    #allocation7 [shape = 's32[2]{0}', space=sflag, size = 0x8, scoped, tag = 'scoped memory for tpu_custom_call.1']
    %25 = vsyncpa [#allocation7], 0
    loop: start=0, step=1, limit=7
    $region2: #{tpu_custom_call.1} parent=1 // loop_pre_header
      _
    $region3: #{tpu_custom_call.1} parent=1 // loop_header
      %s27 = sphi 0, %s31
      %p28 = scmp.ge.s32.totalorder %s27, 7
      %s34 = sphi 0, %s53
      %s35 = sphi 0, %s49
      %s36 = sphi 0, %s45
      %s37 = sphi 0, %s34
      %s38 = sphi 0, %s35
      %s39 = sphi 0, %s36
      %s40 = sphi 0, %s37
      %s41 = sphi 0, %s38
      %s42 = sphi 0, %s39
      %s62 = sphi 0, %s64
      %s65 = sphi 0, %s62
      %s66 = sphi 0, %s65
      %s82 = sphi 0, %s66
      %s94 = sphi 0, %s96
      %s97 = sphi 0, %s94
      %s98 = sphi 0, %s97
      %s114 = sphi 0, %s98
      %s128 = sphi 0, %s130
      %s131 = sphi 0, %s128
      %s132 = sphi 0, %s131
      %s148 = sphi 0, %s132
      %s156 = sphi 0, %s158
      %s159 = sphi 0, %s156
      %s160 = sphi 0, %s159
      %s176 = sphi 0, %s160
    $region4: #{tpu_custom_call.1} parent=1 // loop_header_branch
      %30 = sbr.rel (%p28) target = $region8
    $region5: #{tpu_custom_call.1} parent=1 // loop_body
      %s32 = ssub.s32 %s27, 1
      %s33 = ssub.s32 %s27, 2
      %s43 = sadd.s32 1, %s36
      %p44 = scmp.ge.s32.totalorder %s43, 5
      %s45 = scalar_select %p44, 0, %s43
      %s46 = sadd.s32 1, %s35
      %s47 = scalar_select %p44, %s46, %s35
      %p48 = scmp.ge.s32.totalorder %s47, 1
      %s49 = scalar_select %p48, 0, %s47
      %s50 = sadd.s32 1, %s34
      %s51 = scalar_select %p48, %s50, %s34
      %p52 = scmp.ge.s32.totalorder %s51, 1
      %s53 = scalar_select %p52, 0, %s51
      %s54 = smul.u32 %s34, 5
      %s55 = sadd.s32 %s54, %s36
      %s56 = sld [smem:[#allocation5 + %s55]]
      %s57 = smul.u32 %s53, 5
      %s58 = sadd.s32 %s57, %s45
      %s59 = sld [smem:[#allocation5 + %s58]]
      %s60 = ssub.s32 %s56, %s59
      %p61 = scmp.eq.s32.totalorder %s60, 0
      %s63 = sadd.s32 %s62, 1
      %s64 = scalar_select %p61, %s62, %s63
      %p67 = pneg %p61
      %p68 = scmp.eq.s32.totalorder %s27, 4
      %p69 = por %p67, %p68
      %p70 = scmp.ne.s32.totalorder %s62, %s65
      %p71 = scmp.eq.s32.totalorder %s27, 0
      %p72 = por %p70, %p71
      %p73 = scmp.ne.s32.totalorder %s62, %s65
      %p74 = scmp.eq.s32.totalorder %s32, 4
      %p75 = por %p73, %p74
      %p76 = scmp.ne.s32.totalorder %s65, %s66
      %p77 = scmp.eq.s32.totalorder %s32, 0
      %p78 = por %p76, %p77
      %p79 = scmp.ne.s32.totalorder %s65, %s66
      %p80 = scmp.eq.s32.totalorder %s33, 4
      %p81 = por %p79, %p80
      %p83 = scmp.ne.s32.totalorder %s66, %s82
      %p84 = scmp.eq.s32.totalorder %s33, 0
      %p85 = por %p83, %p84
      %s86 = smul.u32 %s34, 5
      %s87 = sadd.s32 %s86, %s36
      %s88 = sld [smem:[#allocation5 + %s87]]
      %s89 = smul.u32 %s53, 5
      %s90 = sadd.s32 %s89, %s45
      %s91 = sld [smem:[#allocation5 + %s90]]
      %s92 = ssub.s32 %s88, %s91
      %p93 = scmp.eq.s32.totalorder %s92, 0
      %s95 = sadd.s32 %s94, 1
      %s96 = scalar_select %p93, %s94, %s95
      %p99 = pneg %p93
      %p100 = scmp.eq.s32.totalorder %s27, 4
      %p101 = por %p99, %p100
      %p102 = scmp.ne.s32.totalorder %s94, %s97
      %p103 = scmp.eq.s32.totalorder %s27, 0
      %p104 = por %p102, %p103
      %p105 = scmp.ne.s32.totalorder %s94, %s97
      %p106 = scmp.eq.s32.totalorder %s32, 4
      %p107 = por %p105, %p106
      %p108 = scmp.ne.s32.totalorder %s97, %s98
      %p109 = scmp.eq.s32.totalorder %s32, 0
      %p110 = por %p108, %p109
      %p111 = scmp.ne.s32.totalorder %s97, %s98
      %p112 = scmp.eq.s32.totalorder %s33, 4
      %p113 = por %p111, %p112
      %p115 = scmp.ne.s32.totalorder %s98, %s114
      %p116 = scmp.eq.s32.totalorder %s33, 0
      %p117 = por %p115, %p116
      %s118 = smul.u32 %s34, 5
      %s119 = sadd.s32 %s118, %s36
      %s120 = sld [smem:[#allocation3 + %s119]]
      %s121 = smul.u32 %s53, 5
      %s122 = sadd.s32 %s121, %s45
      %s123 = sld [smem:[#allocation3 + %s122]]
      %s124 = ssub.s32 %s120, %s123
      %s125 = ssub.s32 %s35, %s49
      %s126 = sor.u32 %s124, %s125
      %p127 = scmp.eq.s32.totalorder %s126, 0
      %s129 = sadd.s32 %s128, 1
      %s130 = scalar_select %p127, %s128, %s129
      %p133 = pneg %p127
      %p134 = scmp.eq.s32.totalorder %s27, 4
      %p135 = por %p133, %p134
      %p136 = scmp.ne.s32.totalorder %s128, %s131
      %p137 = scmp.eq.s32.totalorder %s27, 0
      %p138 = por %p136, %p137
      %p139 = scmp.ne.s32.totalorder %s128, %s131
      %p140 = scmp.eq.s32.totalorder %s32, 4
      %p141 = por %p139, %p140
      %p142 = scmp.ne.s32.totalorder %s131, %s132
      %p143 = scmp.eq.s32.totalorder %s32, 0
      %p144 = por %p142, %p143
      %p145 = scmp.ne.s32.totalorder %s131, %s132
      %p146 = scmp.eq.s32.totalorder %s33, 4
      %p147 = por %p145, %p146
      %p149 = scmp.ne.s32.totalorder %s132, %s148
      %p150 = scmp.eq.s32.totalorder %s33, 0
      %p151 = por %p149, %p150
      %s152 = ssub.s32 %s34, %s53
      %s153 = ssub.s32 %s35, %s49
      %s154 = sor.u32 %s152, %s153
      %p155 = scmp.eq.s32.totalorder %s154, 0
      %s157 = sadd.s32 %s156, 1
      %s158 = scalar_select %p155, %s156, %s157
      %p161 = pneg %p155
      %p162 = scmp.eq.s32.totalorder %s27, 4
      %p163 = por %p161, %p162
      %p164 = scmp.ne.s32.totalorder %s156, %s159
      %p165 = scmp.eq.s32.totalorder %s27, 0
      %p166 = por %p164, %p165
      %p167 = scmp.ne.s32.totalorder %s156, %s159
      %p168 = scmp.eq.s32.totalorder %s32, 4
      %p169 = por %p167, %p168
      %p170 = scmp.ne.s32.totalorder %s159, %s160
      %p171 = scmp.eq.s32.totalorder %s32, 0
      %p172 = por %p170, %p171
      %p173 = scmp.ne.s32.totalorder %s159, %s160
      %p174 = scmp.eq.s32.totalorder %s33, 4
      %p175 = por %p173, %p174
      %p177 = scmp.ne.s32.totalorder %s160, %s176
      %p178 = scmp.eq.s32.totalorder %s33, 0
      %p179 = por %p177, %p178
      %p180 = scmp.le.s32.totalorder 1, %s27
      %p181 = scmp.lt.s32.totalorder %s27, 6
      %p182 = pnand %p180, %p181
      %p183 = pneg %p182
      // Predicated region
      $region9: #{tpu_custom_call.1} parent=5 // pred_check
        _
      $region10: #{tpu_custom_call.1} parent=5 // pred_check_branch
        %185 = sbr.rel (%p182) target = $region12
      $region11: #{tpu_custom_call.1} parent=5 // pred_region
        %s186 = ssub.s32 %s27, 1
      $region12: #{tpu_custom_call.1} parent=5 // pred_fallthru
        _
      %p187 = scmp.lt.s32.totalorder %s27, 5
      // Predicated region
      $region13: #{tpu_custom_call.1} parent=5 // pred_check
        %p188 = pneg %p187
      $region14: #{tpu_custom_call.1} parent=5 // pred_check_branch
        %190 = sbr.rel (%p188) target = $region16
      $region15: #{tpu_custom_call.1} parent=5 // pred_region
        // Predicated region
        $region17: #{tpu_custom_call.1} parent=15 // pred_check
          %p191 = pneg %p72
        $region18: #{tpu_custom_call.1} parent=15 // pred_check_branch
          %193 = sbr.rel (%p191) target = $region20
        $region19: #{tpu_custom_call.1} parent=15 // pred_region
          %s194 = smul.u32 %s34, 5
          %s195 = sadd.s32 %s194, %s36
          %s196 = sld [smem:[#allocation5 + %s195]]
          %s197 = smul.u32 16, %s196
          %p198 = scmp.lt.s32.totalorder %s197, 79
          %s199 = scalar_select %p198, %s197, 79
          %s200 = smul.addr %s199, 4
          %s201 = scalar_lea.vmem %s3, %s200
          %s202 = smul.u32 %s34, 5
          %s203 = sadd.s32 %s202, %s36
          %s204 = sld [smem:[#allocation5 + %s203]]
          %s205 = smul.u32 16, %s204
        $region20: #{tpu_custom_call.1} parent=15 // pred_fallthru
          _
        // Predicated region
        $region21: #{tpu_custom_call.1} parent=15 // pred_check
          %p206 = pneg %p104
        $region22: #{tpu_custom_call.1} parent=15 // pred_check_branch
          %208 = sbr.rel (%p206) target = $region24
        $region23: #{tpu_custom_call.1} parent=15 // pred_region
          %s209 = smul.u32 %s34, 5
          %s210 = sadd.s32 %s209, %s36
          %s211 = sld [smem:[#allocation5 + %s210]]
          %p212 = scmp.lt.s32.totalorder %s211, 4
          %s213 = scalar_select %p212, %s211, 4
          %s214 = scalar_lea.vmem %s4, %s213
          %s215 = smul.u32 %s34, 5
          %s216 = sadd.s32 %s215, %s36
          %s217 = sld [smem:[#allocation5 + %s216]]
        $region24: #{tpu_custom_call.1} parent=15 // pred_fallthru
          _
        // Predicated region
        $region25: #{tpu_custom_call.1} parent=15 // pred_check
          %p218 = pneg %p138
        $region26: #{tpu_custom_call.1} parent=15 // pred_check_branch
          %220 = sbr.rel (%p218) target = $region28
        $region27: #{tpu_custom_call.1} parent=15 // pred_region
          %s221 = smul.u32 %s34, 5
          %s222 = sadd.s32 %s221, %s36
          %s223 = sld [smem:[#allocation3 + %s222]]
          %p224 = scmp.lt.s32.totalorder %s223, 3
          %s225 = scalar_select %p224, %s223, 3
          %p226 = scmp.lt.s32.totalorder %s35, 0
          %s227 = scalar_select %p226, %s35, 0
          %s228 = smul.addr %s225, 4
          %s229 = sadd.s32 %s227, %s228
          %s230 = smul.addr %s229, 4
          %s231 = scalar_lea.vmem %s5, %s230
          %s232 = smul.u32 %s34, 5
          %s233 = sadd.s32 %s232, %s36
          %s234 = sld [smem:[#allocation3 + %s233]]
        $region28: #{tpu_custom_call.1} parent=15 // pred_fallthru
          _
      $region16: #{tpu_custom_call.1} parent=5 // pred_fallthru
        _
      %p235 = scmp.le.s32.totalorder 1, %s27
      %p236 = scmp.lt.s32.totalorder %s27, 6
      %p237 = pnand %p235, %p236
      %p238 = pneg %p237
      // Predicated region
      $region29: #{tpu_custom_call.1} parent=5 // pred_check
        _
      $region30: #{tpu_custom_call.1} parent=5 // pred_check_branch
        %240 = sbr.rel (%p237) target = $region32
      $region31: #{tpu_custom_call.1} parent=5 // pred_region
        %s241 = ssub.s32 %s27, 1
        %s242 = smul.u32 %s37, 5
        %s243 = sadd.s32 %s242, %s39
        %s244 = sld [smem:[#allocation5 + %s243]]
        %s245 = smul.u32 16, %s244
        %p246 = scmp.lt.s32.totalorder %s245, 79
        %s247 = scalar_select %p246, %s245, 79
        %s248 = smul.addr %s247, 4
        %s249 = scalar_lea.vmem %s3, %s248
        %p250 = pneg %p78
        %p251 = pneg %p75
        %s252 = smul.u32 %s37, 5
        %s253 = sadd.s32 %s252, %s39
        %s254 = sld [smem:[#allocation5 + %s253]]
        %p255 = scmp.lt.s32.totalorder %s254, 4
        %s256 = scalar_select %p255, %s254, 4
        %s257 = scalar_lea.vmem %s4, %s256
        %p258 = pneg %p110
        %p259 = pneg %p107
        %s260 = smul.u32 %s37, 5
        %s261 = sadd.s32 %s260, %s39
        %s262 = sld [smem:[#allocation3 + %s261]]
        %p263 = scmp.lt.s32.totalorder %s262, 3
        %s264 = scalar_select %p263, %s262, 3
        %p265 = scmp.lt.s32.totalorder %s38, 0
        %s266 = scalar_select %p265, %s38, 0
        %s267 = smul.addr %s264, 4
        %s268 = sadd.s32 %s266, %s267
        %s269 = smul.addr %s268, 4
        %s270 = scalar_lea.vmem %s5, %s269
        %p271 = pneg %p144
        %p272 = pneg %p141
        %p273 = pneg %p172
        %p274 = pneg %p169
        %s275 = smul.u32 %s37, 5
        %s276 = sadd.s32 %s275, %s39
        %s277 = sld [smem:[#allocation5 + %s276]]
        %s278 = smul.u32 16, %s277
        %p279 = scmp.lt.s32.totalorder %s278, 79
        %s280 = scalar_select %p279, %s278, 79
        %s281 = smul.addr %s280, 4
        %s282 = scalar_lea.vmem %s3, %s281
        %s283 = smul.u32 %s37, 5
        %s284 = sadd.s32 %s283, %s39
        %s285 = sld [smem:[#allocation5 + %s284]]
        %s286 = smul.u32 16, %s285
        %s287 = smul.u32 %s37, 5
        %s288 = sadd.s32 %s287, %s39
        %s289 = sld [smem:[#allocation5 + %s288]]
        %p290 = scmp.lt.s32.totalorder %s289, 4
        %s291 = scalar_select %p290, %s289, 4
        %s292 = scalar_lea.vmem %s4, %s291
        %s293 = smul.u32 %s37, 5
        %s294 = sadd.s32 %s293, %s39
        %s295 = sld [smem:[#allocation5 + %s294]]
        %s296 = smul.u32 %s37, 5
        %s297 = sadd.s32 %s296, %s39
        %s298 = sld [smem:[#allocation3 + %s297]]
        %p299 = scmp.lt.s32.totalorder %s298, 3
        %s300 = scalar_select %p299, %s298, 3
        %p301 = scmp.lt.s32.totalorder %s38, 0
        %s302 = scalar_select %p301, %s38, 0
        %s303 = smul.addr %s300, 4
        %s304 = sadd.s32 %s302, %s303
        %s305 = smul.addr %s304, 4
        %s306 = scalar_lea.vmem %s5, %s305
        %s307 = smul.u32 %s37, 5
        %s308 = sadd.s32 %s307, %s39
        %s309 = sld [smem:[#allocation3 + %s308]]
        %s311 = smul.u32 %s37, 5
        %s312 = sadd.s32 %s311, %s39
        %p313 = scmp.eq.s32.totalorder %s39, 0
        // Predicated region
        $region33: #{tpu_custom_call.1} parent=31 // pred_check
          %p314 = pneg %p313
        $region34: #{tpu_custom_call.1} parent=31 // pred_check_branch
          %316 = sbr.rel (%p314) target = $region36
        $region35: #{tpu_custom_call.1} parent=31 // pred_region
          %317 = vst [vmem:[#allocation6] sm:$0xff] 0.0
        $region36: #{tpu_custom_call.1} parent=31 // pred_fallthru
          _
        %s318 = sld [smem:[#allocation4 + %s312]]
        %p319 = scmp.ne.s32.totalorder %s318, 0
        // Predicated region
        $region37: #{tpu_custom_call.1} parent=31 // pred_check
          %p320 = pneg %p319
        $region38: #{tpu_custom_call.1} parent=31 // pred_check_branch
          %322 = sbr.rel (%p320) target = $region40
        $region39: #{tpu_custom_call.1} parent=31 // pred_region
          %v323 = vld [vmem:[%s282] sm:$0xf]
          %v324 = vld [vmem:[%s282 + $0x4] sm:$0xf]
          %v325 = vld [vmem:[%s282 + $0x8] sm:$0xf]
          %v326 = vld [vmem:[%s282 + $0xc] sm:$0xf]
          %v327 = vld [vmem:[%s282 + $0x10] sm:$0xf]
          %v328 = vld [vmem:[%s282 + $0x14] sm:$0xf]
          %v329 = vld [vmem:[%s282 + $0x18] sm:$0xf]
          %v330 = vld [vmem:[%s282 + $0x1c] sm:$0xf]
          %v331 = vld [vmem:[%s282 + $0x20] sm:$0xf]
          %v332 = vld [vmem:[%s282 + $0x24] sm:$0xf]
          %v333 = vld [vmem:[%s282 + $0x28] sm:$0xf]
          %v334 = vld [vmem:[%s282 + $0x2c] sm:$0xf]
          %v335 = vld [vmem:[%s282 + $0x30] sm:$0xf]
          %v336 = vld [vmem:[%s282 + $0x34] sm:$0xf]
          %v337 = vld [vmem:[%s282 + $0x38] sm:$0xf]
          %v338 = vld [vmem:[%s282 + $0x3c] sm:$0xf]
          %v339 = vld [vmem:[%s306] sm:$0xf]
          %v340 = vld [vmem:[%s306 + $0x4] sm:$0xf]
          %v341 = vld [vmem:[%s306 + $0x8] sm:$0xf]
          %v342 = vld [vmem:[%s306 + $0xc] sm:$0xf]
          %v359 = vunpack.c.l.b16 %v323
          %v360 = vunpack.c.l.b16 %v324
          %v361 = vunpack.c.l.b16 %v325
          %v362 = vunpack.c.l.b16 %v326
          %v363 = vunpack.c.l.b16 %v327
          %v364 = vunpack.c.l.b16 %v328
          %v365 = vunpack.c.l.b16 %v329
          %v366 = vunpack.c.l.b16 %v330
          %v367 = vunpack.c.l.b16 %v331
          %v368 = vunpack.c.l.b16 %v332
          %v369 = vunpack.c.l.b16 %v333
          %v370 = vunpack.c.l.b16 %v334
          %v371 = vunpack.c.l.b16 %v335
          %v372 = vunpack.c.l.b16 %v336
          %v373 = vunpack.c.l.b16 %v337
          %v374 = vunpack.c.l.b16 %v338
          %v375 = vpack.c.b16 %v360, %v359
          %v376 = vpack.c.b16 %v362, %v361
          %v377 = vpack.c.b16 %v364, %v363
          %v378 = vpack.c.b16 %v366, %v365
          %v379 = vpack.c.b16 %v368, %v367
          %v380 = vpack.c.b16 %v370, %v369
          %v381 = vpack.c.b16 %v372, %v371
          %v382 = vpack.c.b16 %v374, %v373
          %v387 = vunpack.c.l.b16 %v339
          %v388 = vunpack.c.l.b16 %v340
          %v389 = vunpack.c.l.b16 %v341
          %v390 = vunpack.c.l.b16 %v342
          %v391 = vpack.c.b16 %v388, %v387
          %v392 = vpack.c.b16 %v390, %v389
          %vm395 = vcmask 261120
          %v397 = vsel %vm395, %v375, 0
          %v400 = vsel %vm395, %v376, 0
          %v403 = vsel %vm395, %v377, 0
          %v406 = vsel %vm395, %v378, 0
          %v409 = vsel %vm395, %v379, 0
          %v412 = vsel %vm395, %v380, 0
          %v415 = vsel %vm395, %v381, 0
          %v418 = vsel %vm395, %v382, 0
          %420 = vmatprep.subr.bf16.mxu0 0
          %421 = vmatpush1.bf16.msra.mxu0 %v391
          %422 = vmatprep.subr.bf16.mxu0 0
          %423 = vmatpush1.bf16.msra.mxu0 %v392
          %424 = vmatprep.subr.bf16.mxu0 0
          %425 = vmatpush1.bf16.msra.mxu0 0
          %426 = vmatprep.subr.bf16.mxu0 0
          %427 = vmatpush1.bf16.msra.mxu0 0
          %428 = vmatprep.subr.bf16.mxu0 0
          %429 = vmatpush1.bf16.msra.mxu0 0
          %430 = vmatprep.subr.bf16.mxu0 0
          %431 = vmatpush1.bf16.msra.mxu0 0
          %432 = vmatprep.subr.bf16.mxu0 0
          %433 = vmatpush1.bf16.msra.mxu0 0
          %434 = vmatprep.subr.bf16.mxu0 0
          %435 = vmatpush1.bf16.msra.mxu0 0
          %436 = vmatprep.subr.bf16.mxu0 0
          %437 = vmatpush1.bf16.msra.mxu0 0
          %438 = vmatprep.subr.bf16.mxu0 0
          %439 = vmatpush1.bf16.msra.mxu0 0
          %440 = vmatprep.subr.bf16.mxu0 0
          %441 = vmatpush1.bf16.msra.mxu0 0
          %442 = vmatprep.subr.bf16.mxu0 0
          %443 = vmatpush1.bf16.msra.mxu0 0
          %444 = vmatprep.subr.bf16.mxu0 0
          %445 = vmatpush1.bf16.msra.mxu0 0
          %446 = vmatprep.subr.bf16.mxu0 0
          %447 = vmatpush1.bf16.msra.mxu0 0
          %448 = vmatprep.subr.bf16.mxu0 0
          %449 = vmatpush1.bf16.msra.mxu0 0
          %450 = vmatprep.subr.bf16.mxu0 0
          %451 = vmatpush1.bf16.msra.mxu0 0
          %452 = vmatprep.mubr.bf16.mxu0 0
          %453 = vmatmul.mubr.bf16.gmra.mrb[0].mxu0 %v397
          %v454 = vpop.f32.mrb[0].mxu0
          %v455 = vadd.f32 0.0, %v454
          %v456 = vpop.f32.mrb[0].mxu0
          %v457 = vpop.f32.mrb[0].mxu0
          %v458 = vadd.f32 0.0, %v457
          %v459 = vpop.f32.mrb[0].mxu0
          %460 = vmatprep.mubr.bf16.mxu0 0
          %461 = vmatmul.mubr.bf16.gmra.mrb[0].mxu0 %v400
          %v462 = vpop.f32.mrb[0].mxu0
          %v463 = vadd.f32 0.0, %v462
          %v464 = vpop.f32.mrb[0].mxu0
          %v465 = vpop.f32.mrb[0].mxu0
          %v466 = vadd.f32 0.0, %v465
          %v467 = vpop.f32.mrb[0].mxu0
          %468 = vmatprep.mubr.bf16.mxu0 0
          %469 = vmatmul.mubr.bf16.gmra.mrb[0].mxu0 %v403
          %v470 = vpop.f32.mrb[0].mxu0
          %v471 = vadd.f32 0.0, %v470
          %v472 = vpop.f32.mrb[0].mxu0
          %v473 = vpop.f32.mrb[0].mxu0
          %v474 = vadd.f32 0.0, %v473
          %v475 = vpop.f32.mrb[0].mxu0
          %476 = vmatprep.mubr.bf16.mxu0 0
          %477 = vmatmul.mubr.bf16.gmra.mrb[0].mxu0 %v406
          %v478 = vpop.f32.mrb[0].mxu0
          %v479 = vadd.f32 0.0, %v478
          %v480 = vpop.f32.mrb[0].mxu0
          %v481 = vpop.f32.mrb[0].mxu0
          %v482 = vadd.f32 0.0, %v481
          %v483 = vpop.f32.mrb[0].mxu0
          %484 = vmatprep.mubr.bf16.mxu0 0
          %485 = vmatmul.mubr.bf16.gmra.mrb[0].mxu0 %v409
          %v486 = vpop.f32.mrb[0].mxu0
          %v487 = vadd.f32 0.0, %v486
          %v488 = vpop.f32.mrb[0].mxu0
          %v489 = vpop.f32.mrb[0].mxu0
          %v490 = vadd.f32 0.0, %v489
          %v491 = vpop.f32.mrb[0].mxu0
          %492 = vmatprep.mubr.bf16.mxu0 0
          %493 = vmatmul.mubr.bf16.gmra.mrb[0].mxu0 %v412
          %v494 = vpop.f32.mrb[0].mxu0
          %v495 = vadd.f32 0.0, %v494
          %v496 = vpop.f32.mrb[0].mxu0
          %v497 = vpop.f32.mrb[0].mxu0
          %v498 = vadd.f32 0.0, %v497
          %v499 = vpop.f32.mrb[0].mxu0
          %500 = vmatprep.mubr.bf16.mxu0 0
          %501 = vmatmul.mubr.bf16.gmra.mrb[0].mxu0 %v415
          %v502 = vpop.f32.mrb[0].mxu0
          %v503 = vadd.f32 0.0, %v502
          %v504 = vpop.f32.mrb[0].mxu0
          %v505 = vpop.f32.mrb[0].mxu0
          %v506 = vadd.f32 0.0, %v505
          %v507 = vpop.f32.mrb[0].mxu0
          %508 = vmatprep.mubr.bf16.mxu0 0
          %509 = vmatmul.mubr.bf16.gmra.mrb[0].mxu0 %v418
          %v510 = vpop.f32.mrb[0].mxu0
          %v511 = vadd.f32 0.0, %v510
          %v512 = vpop.f32.mrb[0].mxu0
          %v513 = vpop.f32.mrb[0].mxu0
          %v514 = vadd.f32 0.0, %v513
          %v515 = vpop.f32.mrb[0].mxu0
          %516 = vdwg.mxu0
          %v517 = vld [vmem:[%s292] sm:$0x1]
          %v518 = vlaneseq
          %v519 = vshrl.u32 %v518, 7
          %v520 = vlaneseq
          %v521 = vshrl.u32 %v520, 7
          %v522 = vsub.s32 0, %v521
          %v523 = vrot.slane %v517, %v522
          %vm524 = vcmp.eq.s32.totalorder %v523, %v519
          %v525 = vsel %vm524, 1, 0
          %v526 = vcvt.s32.f32 %v525
          %v527 = vpack.c.bf16 %v526, %v526
          %v528 = vld [vmem:[#allocation6] sm:$0xff]
          %v529 = vpack.c.bf16 %v458, %v455
          %v530 = vpack.c.bf16 %v466, %v463
          %v531 = vpack.c.bf16 %v474, %v471
          %v532 = vpack.c.bf16 %v482, %v479
          %v533 = vpack.c.bf16 %v490, %v487
          %v534 = vpack.c.bf16 %v498, %v495
          %v535 = vpack.c.bf16 %v506, %v503
          %v536 = vpack.c.bf16 %v514, %v511
          %537 = vmatprep.subr.bf16.mxu0 0
          %538 = vmatpush1.bf16.msra.mxu0 %v529
          %539 = vmatprep.subr.bf16.mxu0 0
          %540 = vmatpush1.bf16.msra.mxu0 %v530
          %541 = vmatprep.subr.bf16.mxu0 0
          %542 = vmatpush1.bf16.msra.mxu0 %v531
          %543 = vmatprep.subr.bf16.mxu0 0
          %544 = vmatpush1.bf16.msra.mxu0 %v532
          %545 = vmatprep.subr.bf16.mxu0 0
          %546 = vmatpush1.bf16.msra.mxu0 %v533
          %547 = vmatprep.subr.bf16.mxu0 0
          %548 = vmatpush1.bf16.msra.mxu0 %v534
          %549 = vmatprep.subr.bf16.mxu0 0
          %550 = vmatpush1.bf16.msra.mxu0 %v535
          %551 = vmatprep.subr.bf16.mxu0 0
          %552 = vmatpush1.bf16.msra.mxu0 %v536
          %553 = vmatprep.subr.bf16.mxu0 0
          %554 = vmatpush1.bf16.msra.mxu0 0
          %555 = vmatprep.subr.bf16.mxu0 0
          %556 = vmatpush1.bf16.msra.mxu0 0
          %557 = vmatprep.subr.bf16.mxu0 0
          %558 = vmatpush1.bf16.msra.mxu0 0
          %559 = vmatprep.subr.bf16.mxu0 0
          %560 = vmatpush1.bf16.msra.mxu0 0
          %561 = vmatprep.subr.bf16.mxu0 0
          %562 = vmatpush1.bf16.msra.mxu0 0
          %563 = vmatprep.subr.bf16.mxu0 0
          %564 = vmatpush1.bf16.msra.mxu0 0
          %565 = vmatprep.subr.bf16.mxu0 0
          %566 = vmatpush1.bf16.msra.mxu0 0
          %567 = vmatprep.subr.bf16.mxu0 0
          %568 = vmatpush1.bf16.msra.mxu0 0
          %569 = vmatprep.mubr.bf16.mxu0 0
          %570 = vmatmul.mubr.bf16.gmra.mrb[0].mxu0 %v527
          %v571 = vpop.f32.mrb[0].mxu0
          %v572 = vadd.f32 0.0, %v571
          %v573 = vpop.f32.mrb[0].mxu0
          %v574 = vpop.f32.mrb[0].mxu0
          %v575 = vpop.f32.mrb[0].mxu0
          %576 = vdwg.mxu0
          %v577 = vadd.f32 %v528, %v572
          %578 = vst [vmem:[#allocation6] sm:$0xff] %v577
        $region40: #{tpu_custom_call.1} parent=31 // pred_fallthru
          _
        // Predicated region
        $region41: #{tpu_custom_call.1} parent=31 // pred_check
          %p579 = pneg %p169
        $region42: #{tpu_custom_call.1} parent=31 // pred_check_branch
          %581 = sbr.rel (%p579) target = $region44
        $region43: #{tpu_custom_call.1} parent=31 // pred_region
          %s583 = ssub.s32 128, 128
          %584 = vsyncadd [#allocation7], %s583
          %s585 = sadd.s32 %s38, %s37
          %s586 = smul.addr %s585, 128
          %s587 = scalar_lea.hbm %s6, %s586
          %s589 = sshll.u32 [#allocation6], 4
          %s590 = int_to_ptr.vmem [resolvable:$true] %s589
          %592 = dma.vmem_to_hbm [thread:$0]  %s590, 128, %s587, [#allocation7]
        $region44: #{tpu_custom_call.1} parent=31 // pred_fallthru
          _
        // Predicated region
        $region45: #{tpu_custom_call.1} parent=31 // pred_check
          %p593 = pneg %p169
        $region46: #{tpu_custom_call.1} parent=31 // pred_check_branch
          %595 = sbr.rel (%p593) target = $region48
        $region47: #{tpu_custom_call.1} parent=31 // pred_region
          %596 = dma.done [#allocation7], 128
        $region48: #{tpu_custom_call.1} parent=31 // pred_fallthru
          _
      $region32: #{tpu_custom_call.1} parent=5 // pred_fallthru
        _
      %p597 = scmp.le.s32.totalorder 2, %s27
      // Predicated region
      $region49: #{tpu_custom_call.1} parent=5 // pred_check
        %p598 = pneg %p597
      $region50: #{tpu_custom_call.1} parent=5 // pred_check_branch
        %600 = sbr.rel (%p598) target = $region52
      $region51: #{tpu_custom_call.1} parent=5 // pred_region
        %s601 = ssub.s32 %s27, 2
      $region52: #{tpu_custom_call.1} parent=5 // pred_fallthru
        _
    $region6: #{tpu_custom_call.1} parent=1 // loop_footer
      %s31 = sadd.s32 1, %s27
    $region7: #{tpu_custom_call.1} parent=1 // loop_footer_branch
      %26 = sbr.rel target = $region3
    $region8: #{tpu_custom_call.1} parent=1 // loop_exit
      _
    %602 = vsyncpa [#allocation7], 1
    %s603 = scalar_lea.sflag [#allocation7], 1
    %604 = vsyncpa %s603, 1

</llo_original>
